<compile_context>
chip_gen: v6e
topology: v6e:2x2x1
jax: 0.10.0
libtpu: 0.0.40
codegen_flags: <defaults>
</compile_context>

<pallas_src>
import numpy as np
import jax
import jax.numpy as jnp
from jax import lax
from jax.experimental import pallas as pl
from jax.experimental.pallas import tpu as pltpu

LANES = 128
MIN_ROWS = 8                 # f32 sublane granularity
MAX_TILE_ROWS = 1024         # (1024,128) f32 tile = 512 KiB per input buffer

_INV_SQRT_2PI = float(1.0 / np.sqrt(2.0 * np.pi))
_EPS = 1e-9


def _kl_elem(p, t, v):
    """Live part of kl_loss (negative log Gaussian likelihood).

    Mathematically identical to
        sv = sigmoid(v); -log(exp(-(p-t)^2 / sv / 2) / sqrt(2*pi*sv) + 1e-9)
    but written with 1/sigmoid(v) = 1 + exp(-v) so only 4 EUP
    transcendentals (exp, sqrt, exp, log) are needed per element.
    """
    d = p - t
    inv_sv = 1.0 + jnp.exp(-v)                 # = 1 / sigmoid(v)
    z = 0.5 * (d * d) * inv_sv                 # = (p-t)^2 / sv / 2
    scale = jnp.sqrt(inv_sv) * _INV_SQRT_2PI   # = 1 / sqrt(2*pi*sv)
    return -jnp.log(jnp.exp(-z) * scale + _EPS)


def _valid_mask(n, tile_rows):
    """mask[r, c] = True iff the flat element index of (r, c) in this tile < n."""
    i = pl.program_id(0)
    row = lax.broadcasted_iota(jnp.int32, (tile_rows, LANES), 0)
    col = lax.broadcasted_iota(jnp.int32, (tile_rows, LANES), 1)
    flat = (i * tile_rows + row) * LANES + col
    return flat < n


def _make_sum_kernel(n, tile_rows, weighted):
    """Per-tile partial sums, folded into an (8,128) lane-dense output block."""
    def kernel(*refs):
        if weighted:
            p_ref, t_ref, v_ref, w_ref, out_ref = refs
        else:
            p_ref, t_ref, v_ref, out_ref = refs
        loss = _kl_elem(p_ref[...], t_ref[...], v_ref[...])
        if weighted:
            loss = loss * w_ref[...]
        loss = jnp.where(_valid_mask(n, tile_rows), loss, 0.0)
        # Fold groups of 8 rows with plain VPU adds; the cross-lane/sublane
        # reduce to a scalar happens once, outside the kernel.
        out_ref[...] = loss.reshape(tile_rows // MIN_ROWS, MIN_ROWS, LANES).sum(axis=0)
    return kernel


def _make_elem_kernel(n, tile_rows, weighted):
    """Elementwise KL loss (reduction='none')."""
    def kernel(*refs):
        if weighted:
            p_ref, t_ref, v_ref, w_ref, out_ref = refs
        else:
            p_ref, t_ref, v_ref, out_ref = refs
        loss = _kl_elem(p_ref[...], t_ref[...], v_ref[...])
        if weighted:
            loss = loss * w_ref[...]
        out_ref[...] = jnp.where(_valid_mask(n, tile_rows), loss, 0.0)
    return kernel


def _to_tiles(x, padded_len):
    """Flatten, minimally pad to a multiple of 8*128 and view as (rows, 128)."""
    x = x.reshape(-1).astype(jnp.float32)
    pad = padded_len - x.shape[0]
    if pad:
        x = jnp.pad(x, (0, pad))
    return x.reshape(-1, LANES)


def _kl_loss_pallas(pred, target, variances, weight, reduction,
                    max_tile_rows=MAX_TILE_ROWS):
    """reduction='none' -> elementwise loss (pred.shape); otherwise -> scalar sum
    of the (optionally weighted) elementwise loss. Caller finishes mean/sum."""
    n = int(pred.size)
    block_elems = MIN_ROWS * LANES
    padded_len = ((n + block_elems - 1) // block_elems) * block_elems
    rows = padded_len // LANES                        # multiple of 8
    tile_rows = min(max_tile_rows, rows)              # multiple of 8
    num_tiles = (rows + tile_rows - 1) // tile_rows   # ragged tail masked in-kernel

    weighted = weight is not None
    arrays = [_to_tiles(pred, padded_len),
              _to_tiles(target, padded_len),
              _to_tiles(variances, padded_len)]
    if weighted:
        arrays.append(_to_tiles(weight, padded_len))

    tile_spec = pl.BlockSpec((tile_rows, LANES), lambda i: (i, 0))
    in_specs = [tile_spec] * len(arrays)
    cparams = pltpu.CompilerParams(dimension_semantics=("parallel",))

    if reduction == 'none':
        out = pl.pallas_call(
            _make_elem_kernel(n, tile_rows, weighted),
            out_shape=jax.ShapeDtypeStruct((rows, LANES), jnp.float32),
            grid_spec=pltpu.PrefetchScalarGridSpec(
                num_scalar_prefetch=0,
                grid=(num_tiles,),
                in_specs=in_specs,
                out_specs=tile_spec,
            ),
            compiler_params=cparams,
        )(*arrays)
        return out.reshape(-1)[:n].reshape(pred.shape)

    # 'mean' / 'sum': per-tile lane-dense partial sums, final reduce in JAX.
    partial = pl.pallas_call(
        _make_sum_kernel(n, tile_rows, weighted),
        out_shape=jax.ShapeDtypeStruct((num_tiles * MIN_ROWS, LANES), jnp.float32),
        grid_spec=pltpu.PrefetchScalarGridSpec(
            num_scalar_prefetch=0,
            grid=(num_tiles,),
            in_specs=in_specs,
            out_specs=pl.BlockSpec((MIN_ROWS, LANES), lambda i: (i, 0)),
        ),
        compiler_params=cparams,
    )(*arrays)
    return jnp.sum(partial)


class KLLoss:
    """JAX/Pallas port of mmrotate KLLoss (forward pass)."""

    def __init__(self, beta=1.0, reduction='mean', loss_weight=1.0):
        assert beta > 0
        self.beta = beta            # no effect on the live output (dead branch)
        self.reduction = reduction
        self.loss_weight = loss_weight

    def __call__(self, pred, target, variances, weight=None, avg_factor=None,
                 reduction_override=None):
        assert reduction_override in (None, 'none', 'mean', 'sum')
        reduction = reduction_override if reduction_override else self.reduction

        # target.numel() == 0 -> pred.sum() * 0 (mmdet convention)
        if target.size == 0:
            return jnp.sum(pred) * 0.0

        assert pred.shape == target.shape == variances.shape
        if weight is not None:
            assert weight.shape == pred.shape

        if reduction == 'none':
            loss = _kl_loss_pallas(pred, target, variances, weight, 'none')
            return self.loss_weight * loss

        total = _kl_loss_pallas(pred, target, variances, weight, 'sum')
        if reduction == 'sum':
            loss = total
        else:  # 'mean'
            if avg_factor is None:
                loss = total / pred.size      # torch .mean() over all elements
            else:
                loss = total / avg_factor
        return self.loss_weight * loss


def _kl_loss_ref(pred, target, variances, weight=None, reduction='mean',
                 avg_factor=None, loss_weight=1.0):
    """Pure-JAX reference using the original sigmoid formulation."""
    p = pred.astype(jnp.float32)
    t = target.astype(jnp.float32)
    v = variances.astype(jnp.float32)
    sv = jax.nn.sigmoid(v)
    loss = -jnp.log(jnp.exp(-(p - t) ** 2.0 / sv / 2.0)
                    / jnp.sqrt(2.0 * np.pi * sv) + 1e-9)
    if weight is not None:
        loss = loss * weight.astype(jnp.float32)
    if reduction == 'none':
        return loss_weight * loss
    if reduction == 'sum':
        return loss_weight * jnp.sum(loss)
    if avg_factor is None:
        return loss_weight * jnp.mean(loss)
    return loss_weight * jnp.sum(loss) / avg_factor


if __name__ == "__main__":
    key = jax.random.PRNGKey(0)
    k1, k2, k3, k4 = jax.random.split(key, 4)

    # Rotated-box regression deltas: (num_boxes, 5)
    N, D = 256, 5
    pred = jax.random.normal(k1, (N, D), jnp.float32)
    target = jax.random.normal(k2, (N, D), jnp.float32)
    variances = jax.random.normal(k3, (N, D), jnp.float32)
    weight = jax.random.uniform(k4, (N, D), jnp.float32)

    loss_mod = KLLoss(beta=1.0, reduction='mean', loss_weight=1.0)

    # mean reduction, no weight (common path: no dummy ones stream)
    out_mean = jax.block_until_ready(loss_mod(pred, target, variances))
    ref_mean = _kl_loss_ref(pred, target, variances, reduction='mean')
    assert np.allclose(np.asarray(out_mean), np.asarray(ref_mean),
                       rtol=1e-4, atol=1e-4), (out_mean, ref_mean)

    # weighted sum reduction
    out_sum = jax.block_until_ready(
        loss_mod(pred, target, variances, weight=weight, reduction_override='sum'))
    ref_sum = _kl_loss_ref(pred, target, variances, weight=weight, reduction='sum')
    assert np.allclose(np.asarray(out_sum), np.asarray(ref_sum),
                       rtol=1e-4, atol=1e-3), (out_sum, ref_sum)

    # weighted mean with avg_factor
    out_avg = jax.block_until_ready(
        loss_mod(pred, target, variances, weight=weight, avg_factor=123.0))
    ref_avg = _kl_loss_ref(pred, target, variances, weight=weight,
                           reduction='mean', avg_factor=123.0)
    assert np.allclose(np.asarray(out_avg), np.asarray(ref_avg),
                       rtol=1e-4, atol=1e-4), (out_avg, ref_avg)

    # elementwise (reduction='none')
    out_none = jax.block_until_ready(
        loss_mod(pred, target, variances, reduction_override='none'))
    ref_none = _kl_loss_ref(pred, target, variances, reduction='none')
    assert out_none.shape == (N, D)
    assert np.allclose(np.asarray(out_none), np.asarray(ref_none),
                       rtol=1e-4, atol=1e-4)

    # multi-tile grid with ragged tail (exercises in-kernel mask + OOB last block)
    N2 = 512   # n = 2560 -> rows = 24, tile = 16 -> grid = 2, last block partial
    p2 = jax.random.normal(k1, (N2, D), jnp.float32)
    t2 = jax.random.normal(k2, (N2, D), jnp.float32)
    v2 = jax.random.normal(k3, (N2, D), jnp.float32)
    small_sum = jax.block_until_ready(
        _kl_loss_pallas(p2, t2, v2, None, 'sum', max_tile_rows=16))
    ref_small_sum = _kl_loss_ref(p2, t2, v2, reduction='sum')
    assert np.allclose(np.asarray(small_sum), np.asarray(ref_small_sum),
                       rtol=1e-4, atol=1e-3), (small_sum, ref_small_sum)
    small_none = jax.block_until_ready(
        _kl_loss_pallas(p2, t2, v2, None, 'none', max_tile_rows=16))
    ref_small_none = _kl_loss_ref(p2, t2, v2, reduction='none')
    assert np.allclose(np.asarray(small_none), np.asarray(ref_small_none),
                       rtol=1e-4, atol=1e-4)

    # empty target -> pred.sum() * 0
    empty = jnp.zeros((0, D), jnp.float32)
    out_empty = jax.block_until_ready(loss_mod(empty, empty, empty))
    assert float(out_empty) == 0.0

    print("KERNEL_OK")
</pallas_src>

<mosaic_0001>
module attributes {stable_mosaic.version = 11 : i64} {
  func.func @kernel(%arg0: i32, %arg1: memref<16x128xf32, #tpu.memory_space<vmem>>, %arg2: memref<16x128xf32, #tpu.memory_space<vmem>>, %arg3: memref<16x128xf32, #tpu.memory_space<vmem>>, %arg4: memref<8x128xf32, #tpu.memory_space<vmem>>) attributes {dimension_semantics = [#tpu.dimension_semantics<parallel>], iteration_bounds = array<i64: 1>, scalar_prefetch = 0 : i64, scratch_operands = 0 : i64, tpu.core_type = #tpu.core_type<tc>, window_params = [{transform_indices = @transform_0, window_bounds = array<i64: 16, 128>}, {transform_indices = @transform_1, window_bounds = array<i64: 16, 128>}, {transform_indices = @transform_2, window_bounds = array<i64: 16, 128>}, {transform_indices = @transform_3, window_bounds = array<i64: 8, 128>}]} {
    %c0 = arith.constant 0 : index
    %c0_0 = arith.constant 0 : index
    %0 = vector.load %arg1[%c0, %c0_0] : memref<16x128xf32, #tpu.memory_space<vmem>>, vector<16x128xf32>
    %c0_1 = arith.constant 0 : index
    %c0_2 = arith.constant 0 : index
    %1 = vector.load %arg2[%c0_1, %c0_2] : memref<16x128xf32, #tpu.memory_space<vmem>>, vector<16x128xf32>
    %c0_3 = arith.constant 0 : index
    %c0_4 = arith.constant 0 : index
    %2 = vector.load %arg3[%c0_3, %c0_4] : memref<16x128xf32, #tpu.memory_space<vmem>>, vector<16x128xf32>
    %3 = arith.subf %0, %1 : vector<16x128xf32>
    %cst = arith.constant 0.000000e+00 : f32
    %4 = vector.broadcast %cst : f32 to vector<16x128xf32>
    %5 = arith.subf %4, %2 : vector<16x128xf32>
    %6 = math.exp %5 : vector<16x128xf32>
    %cst_5 = arith.constant 1.000000e+00 : f32
    %7 = vector.broadcast %cst_5 : f32 to vector<16x128xf32>
    %8 = arith.addf %7, %6 : vector<16x128xf32>
    %9 = arith.mulf %3, %3 : vector<16x128xf32>
    %cst_6 = arith.constant 5.000000e-01 : f32
    %10 = vector.broadcast %cst_6 : f32 to vector<16x128xf32>
    %11 = arith.mulf %10, %9 : vector<16x128xf32>
    %12 = arith.mulf %11, %8 : vector<16x128xf32>
    %13 = math.sqrt %8 : vector<16x128xf32>
    %cst_7 = arith.constant 0.398942292 : f32
    %14 = vector.broadcast %cst_7 : f32 to vector<16x128xf32>
    %15 = arith.mulf %13, %14 : vector<16x128xf32>
    %cst_8 = arith.constant 0.000000e+00 : f32
    %16 = vector.broadcast %cst_8 : f32 to vector<16x128xf32>
    %17 = arith.subf %16, %12 : vector<16x128xf32>
    %18 = math.exp %17 : vector<16x128xf32>
    %19 = arith.mulf %18, %15 : vector<16x128xf32>
    %cst_9 = arith.constant 9.99999971E-10 : f32
    %20 = vector.broadcast %cst_9 : f32 to vector<16x128xf32>
    %21 = arith.addf %19, %20 : vector<16x128xf32>
    %22 = math.log %21 : vector<16x128xf32>
    %cst_10 = arith.constant 0.000000e+00 : f32
    %23 = vector.broadcast %cst_10 : f32 to vector<16x128xf32>
    %24 = arith.subf %23, %22 : vector<16x128xf32>
    %25 = tpu.iota {dimensions = array<i32: 0>} : vector<16x128xi32>
    %26 = tpu.iota {dimensions = array<i32: 1>} : vector<16x128xi32>
    %c16_i32 = arith.constant 16 : i32
    %27 = arith.muli %arg0, %c16_i32 : i32
    %28 = vector.broadcast %27 : i32 to vector<16x128xi32>
    %29 = arith.addi %28, %25 : vector<16x128xi32>
    %c128_i32 = arith.constant 128 : i32
    %30 = vector.broadcast %c128_i32 : i32 to vector<16x128xi32>
    %31 = arith.muli %29, %30 : vector<16x128xi32>
    %32 = arith.addi %31, %26 : vector<16x128xi32>
    %c1280_i32 = arith.constant 1280 : i32
    %33 = vector.broadcast %c1280_i32 : i32 to vector<16x128xi32>
    %34 = arith.cmpi slt, %32, %33 : vector<16x128xi32>
    %cst_11 = arith.constant 0.000000e+00 : f32
    %35 = vector.broadcast %cst_11 : f32 to vector<16x128xf32>
    %36 = arith.select %34, %24, %35 : vector<16x128xi1>, vector<16x128xf32>
    %37 = vector.shape_cast %36 : vector<16x128xf32> to vector<2x8x128xf32>
    %cst_12 = arith.constant dense<0.000000e+00> : vector<8x128xf32>
    %38 = vector.multi_reduction <add>, %37, %cst_12 [0] : vector<2x8x128xf32> to vector<8x128xf32>
    %c0_13 = arith.constant 0 : index
    %c0_14 = arith.constant 0 : index
    %39 = vector.load %arg4[%c0_13, %c0_14] : memref<8x128xf32, #tpu.memory_space<vmem>>, vector<8x128xf32>
    tpu.vector_store %arg4[%c0_13, %c0_14], %38 {strides = array<i32>} : memref<8x128xf32, #tpu.memory_space<vmem>>, vector<8x128xf32>,
    return
  }
  func.func @transform_0(%arg0: i32) -> (i32, i32) {
    %c0_i32 = arith.constant 0 : i32
    %c0_i32_0 = arith.constant 0 : i32
    return %arg0, %c0_i32 : i32, i32
  }
  func.func @transform_1(%arg0: i32) -> (i32, i32) {
    %c0_i32 = arith.constant 0 : i32
    %c0_i32_0 = arith.constant 0 : i32
    return %arg0, %c0_i32 : i32, i32
  }
  func.func @transform_2(%arg0: i32) -> (i32, i32) {
    %c0_i32 = arith.constant 0 : i32
    %c0_i32_0 = arith.constant 0 : i32
    return %arg0, %c0_i32 : i32, i32
  }
  func.func @transform_3(%arg0: i32) -> (i32, i32) {
    %c0_i32 = arith.constant 0 : i32
    %c0_i32_0 = arith.constant 0 : i32
    return %arg0, %c0_i32 : i32, i32
  }
}

</mosaic_0001>

<llo_original>
// kernel: tpu_custom_call.1
$region0: #{tpu_custom_call.1}
  #allocation0 [shape = 'u32[]', space=smem, size = 0x4, offset = 0x4, fixed_abs, tag = 'smem constant byte address 0x4 - core index']
  #allocation1 [shape = 'u32[144,128]{1,0:T(1,128)}', space=vmem, size = 0x12000, scoped, tag = 'internal scratch']
  %s0 = inlined_call_operand.hbm [shape: f32[16,128], index: 0, kind: input, shape index: {}]
  %s1 = inlined_call_operand.hbm [shape: f32[16,128], index: 1, kind: input, shape index: {}]
  %s2 = inlined_call_operand.hbm [shape: f32[16,128], index: 2, kind: input, shape index: {}]
  %s3 = inlined_call_operand.hbm [shape: f32[8,128], index: 3, kind: output, shape index: {}]
  %s4 = sld [smem:[#allocation0]]
  $region34: #{tpu_custom_call.1} parent=0
    _
  %s6 = ssub.s32 1, %s4
  %s7 = scalar_select 0, %s6, %s4
  $region1: #{tpu_custom_call.1} parent=0
    #allocation2 [shape = 'u8[8192]{0}', space=vmem, size = 0x2000, scoped, tag = 'input window, operand 0, single buffered']
    #allocation3 [shape = 's32[1]{0}', space=sflag, size = 0x4, scoped, tag = 'scoped memory for tpu_custom_call.1']
    #allocation4 [shape = 's32[1]{0}', space=sflag, size = 0x4, scoped, tag = 'scoped memory for tpu_custom_call.1']
    #allocation5 [shape = 'u8[8192]{0}', space=vmem, size = 0x2000, scoped, tag = 'input window, operand 1, single buffered']
    #allocation6 [shape = 's32[1]{0}', space=sflag, size = 0x4, scoped, tag = 'scoped memory for tpu_custom_call.1']
    #allocation7 [shape = 'u8[8192]{0}', space=vmem, size = 0x2000, scoped, tag = 'input window, operand 2, single buffered']
    #allocation8 [shape = 'u8[4096]{0}', space=vmem, size = 0x1000, scoped, tag = 'output window, operand 0, single buffered']
    %8 = vsyncpa [#allocation3], 0
    %9 = vsyncpa [#allocation6], 0
    %10 = vsyncpa [#allocation4], 0
    // Predicated region
    $region2: #{tpu_custom_call.1} parent=1 // pred_check
      _
    $region3: #{tpu_custom_call.1} parent=1 // pred_check_branch
      %12 = sbr.rel (0) target = $region5
    $region4: #{tpu_custom_call.1} parent=1 // pred_region
      %s14 = ssub.s32 256, 256
      %15 = vsyncadd [#allocation3], %s14
      %s16 = sshll.u32 [#allocation2], 4
      %s17 = int_to_ptr.vmem [resolvable:$true] %s16
      %22 = dma.hbm_to_vmem [thread:$0]  %s0, 256, %s17, [#allocation3], 128, 128, 8
    $region5: #{tpu_custom_call.1} parent=1 // pred_fallthru
      _
    // Predicated region
    $region6: #{tpu_custom_call.1} parent=1 // pred_check
      _
    $region7: #{tpu_custom_call.1} parent=1 // pred_check_branch
      %24 = sbr.rel (0) target = $region9
    $region8: #{tpu_custom_call.1} parent=1 // pred_region
      %s26 = ssub.s32 256, 256
      %27 = vsyncadd [#allocation6], %s26
      %s28 = sshll.u32 [#allocation5], 4
      %s29 = int_to_ptr.vmem [resolvable:$true] %s28
      %34 = dma.hbm_to_vmem [thread:$0]  %s1, 256, %s29, [#allocation6], 128, 128, 8
    $region9: #{tpu_custom_call.1} parent=1 // pred_fallthru
      _
    // Predicated region
    $region10: #{tpu_custom_call.1} parent=1 // pred_check
      _
    $region11: #{tpu_custom_call.1} parent=1 // pred_check_branch
      %36 = sbr.rel (0) target = $region13
    $region12: #{tpu_custom_call.1} parent=1 // pred_region
      %s38 = ssub.s32 256, 256
      %39 = vsyncadd [#allocation6], %s38
      %s40 = sshll.u32 [#allocation7], 4
      %s41 = int_to_ptr.vmem [resolvable:$true] %s40
      %46 = dma.hbm_to_vmem [thread:$0]  %s2, 256, %s41, [#allocation6], 128, 128, 8
    $region13: #{tpu_custom_call.1} parent=1 // pred_fallthru
      _
    // Predicated region
    $region14: #{tpu_custom_call.1} parent=1 // pred_check
      _
    $region15: #{tpu_custom_call.1} parent=1 // pred_check_branch
      %48 = sbr.rel (0) target = $region17
    $region16: #{tpu_custom_call.1} parent=1 // pred_region
      %49 = dma.done [#allocation3], 256
    $region17: #{tpu_custom_call.1} parent=1 // pred_fallthru
      _
    // Predicated region
    $region18: #{tpu_custom_call.1} parent=1 // pred_check
      _
    $region19: #{tpu_custom_call.1} parent=1 // pred_check_branch
      %51 = sbr.rel (0) target = $region21
    $region20: #{tpu_custom_call.1} parent=1 // pred_region
      %52 = dma.done [#allocation6], 256
    $region21: #{tpu_custom_call.1} parent=1 // pred_fallthru
      _
    // Predicated region
    $region22: #{tpu_custom_call.1} parent=1 // pred_check
      _
    $region23: #{tpu_custom_call.1} parent=1 // pred_check_branch
      %54 = sbr.rel (0) target = $region25
    $region24: #{tpu_custom_call.1} parent=1 // pred_region
      %55 = dma.done [#allocation6], 256
    $region25: #{tpu_custom_call.1} parent=1 // pred_fallthru
      _
    %v56 = vld [vmem:[#allocation2] sm:$0xff]
    %v57 = vld [vmem:[#allocation2 + $0x8] sm:$0xff]
    %v58 = vld [vmem:[#allocation5] sm:$0xff]
    %v59 = vld [vmem:[#allocation5 + $0x8] sm:$0xff]
    %v60 = vld [vmem:[#allocation7] sm:$0xff]
    %v61 = vld [vmem:[#allocation7 + $0x8] sm:$0xff]
    %v62 = vsub.f32 %v56, %v58
    %v63 = vsub.f32 %v57, %v59
    %v64 = vsub.f32 0.0, %v60
    %v65 = vsub.f32 0.0, %v61
    %v66 = vmul.f32 %v64, 1.442695
    %v67 = vpow.pop %v66
    %v68 = vmul.f32 %v65, 1.442695
    %v69 = vpow.pop %v68
    %v70 = vadd.f32 %v67, 1.0
    %v71 = vadd.f32 %v69, 1.0
    %v72 = vmul.f32 %v62, %v62
    %v73 = vmul.f32 %v63, %v63
    %v74 = vmul.f32 %v72, 0.5
    %v75 = vmul.f32 %v73, 0.5
    %v76 = vmul.f32 %v74, %v70
    %v77 = vmul.f32 %v75, %v71
    %v78 = vrsqrt.pop %v70
    %v79 = vmul.f32 %v70, %v78
    %vm80 = vcmp.eq.f32.partialorder %v70, inf
    %v81 = vsel %vm80, %v70, %v79
    %vm82 = vcmp.eq.f32.partialorder %v70, 0.0
    %v83 = vand.u32 %v70, 2147483648
    %v84 = vsel %vm82, %v83, %v81
    %v85 = vrsqrt.pop %v71
    %v86 = vmul.f32 %v71, %v85
    %vm87 = vcmp.eq.f32.partialorder %v71, inf
    %v88 = vsel %vm87, %v71, %v86
    %vm89 = vcmp.eq.f32.partialorder %v71, 0.0
    %v90 = vand.u32 %v71, 2147483648
    %v91 = vsel %vm89, %v90, %v88
    %v92 = vmul.f32 %v84, 0.3989423
    %v93 = vmul.f32 %v91, 0.3989423
    %v94 = vsub.f32 0.0, %v76
    %v95 = vsub.f32 0.0, %v77
    %v96 = vmul.f32 %v94, 1.442695
    %v97 = vpow.pop %v96
    %v98 = vmul.f32 %v95, 1.442695
    %v99 = vpow.pop %v98
    %v100 = vmul.f32 %v97, %v92
    %v101 = vmul.f32 %v99, %v93
    %v102 = vadd.f32 %v100, 1e-09
    %v103 = vadd.f32 %v101, 1e-09
    %v104 = vlog2.pop %v102
    %v105 = vmul.f32 %v104, 0.6931472
    %v106 = vlog2.pop %v103
    %v107 = vmul.f32 %v106, 0.6931472
    %v108 = vsub.f32 0.0, %v105
    %v109 = vsub.f32 0.0, %v107
    %v110 = vlaneseq
    %v111 = vshrl.u32 %v110, 7
    %v112 = vadd.s32 %v111, 8
    %v113 = vlaneseq
    %v114 = vand.u32 %v113, 127
    %s115 = smul.u32 0, 16
    %v116 = vstv %s115
    %v117 = vadd.s32 %v116, %v111
    %v118 = vadd.s32 %v116, %v112
    %v119 = vmul.u32 %v117, 128
    %v120 = vmul.u32 %v118, 128
    %v121 = vadd.s32 %v119, %v114
    %v122 = vadd.s32 %v120, %v114
    %vm123 = vcmp.lt.s32.totalorder %v121, 1280
    %vm124 = vcmp.lt.s32.totalorder %v122, 1280
    %v125 = vsel %vm123, %v108, 0.0
    %v126 = vsel %vm124, %v109, 0.0
    %v127 = vadd.f32 %v125, %v126
    %128 = vst [vmem:[#allocation8] sm:$0xff] %v127
    // Predicated region
    $region26: #{tpu_custom_call.1} parent=1 // pred_check
      _
    $region27: #{tpu_custom_call.1} parent=1 // pred_check_branch
      %130 = sbr.rel (0) target = $region29
    $region28: #{tpu_custom_call.1} parent=1 // pred_region
      %s132 = ssub.s32 128, 128
      %133 = vsyncadd [#allocation4], %s132
      %s135 = sshll.u32 [#allocation8], 4
      %s136 = int_to_ptr.vmem [resolvable:$true] %s135
      %138 = dma.vmem_to_hbm [thread:$0]  %s136, 128, %s3, [#allocation4]
    $region29: #{tpu_custom_call.1} parent=1 // pred_fallthru
      _
    // Predicated region
    $region30: #{tpu_custom_call.1} parent=1 // pred_check
      _
    $region31: #{tpu_custom_call.1} parent=1 // pred_check_branch
      %140 = sbr.rel (0) target = $region33
    $region32: #{tpu_custom_call.1} parent=1 // pred_region
      %141 = dma.done [#allocation4], 128
    $region33: #{tpu_custom_call.1} parent=1 // pred_fallthru
      _
    %142 = vsyncpa [#allocation3], 1
    %143 = vsyncpa [#allocation6], 1
    %144 = vsyncpa [#allocation4], 1

</llo_original>
